<compile_context>
chip_gen: v6e
topology: v6e:2x2x1
jax: 0.10.0
libtpu: 0.0.40
codegen_flags: <defaults>
</compile_context>

<pallas_src>
from functools import partial

import jax
import jax.numpy as jnp
from jax.experimental import pallas as pl
from jax.experimental.pallas import tpu as pltpu


def _se_kernel(x_ref, w1_ref, w2_ref, o_ref, *, channels_last):
    # channels_last=False: x_ref (TB, C, HW)   -> pool over lanes (axis -1)
    # channels_last=True : x_ref (TB, HW, C)   -> pool over sublanes (axis 1)
    # w1_ref: (hidden, C)  (PyTorch Linear weight, no bias)
    # w2_ref: (C, hidden)
    x = x_ref[...]                                        # native dtype, no full-tile cast

    reduce_axis = 1 if channels_last else 2
    pooled = jnp.mean(x, axis=reduce_axis, dtype=jnp.float32)   # (TB, C), f32 accumulation

    # Linear(C -> hidden): contract pooled's C with w1's in_features axis.
    h = jax.lax.dot_general(pooled, w1_ref[...],
                            (((1,), (1,)), ((), ())),
                            preferred_element_type=jnp.float32)  # (TB, hidden)
    h = jnp.maximum(h, 0.0)

    # Linear(hidden -> C): contract h's hidden with w2's in_features axis.
    g = jax.lax.dot_general(h, w2_ref[...],
                            (((1,), (1,)), ((), ())),
                            preferred_element_type=jnp.float32)  # (TB, C)
    g = jax.nn.sigmoid(g).astype(x.dtype)                        # cast only the gate

    if channels_last:
        o_ref[...] = x * g[:, None, :]
    else:
        o_ref[...] = x * g[:, :, None]


def _vmem_limit_bytes():
    """~3/4 of physical VMEM (96 MiB on v5e/v6e, 48 MiB on v7x)."""
    try:
        cap = pltpu.get_tpu_info().vmem_capacity_bytes
    except Exception:
        cap = 64 * 1024 * 1024  # conservative fallback (v7x-sized)
    return int(cap * 3) // 4


def _choose_tb(B, max_tb):
    """Largest divisor of B that fits the VMEM budget, preferring >=2 grid steps."""
    divisors = [d for d in range(1, B + 1) if B % d == 0]
    fitting = [d for d in divisors if d <= max_tb] or [1]
    multi_step = [d for d in fitting if B // d >= 2]
    return max(multi_step if multi_step else fitting)


def squeeze_excitation(x, w1, w2):
    """x: (B, C, H, W).  w1: (hidden, C), w2: (C, hidden) — PyTorch Linear weights (no bias)."""
    B, C, H, W = x.shape
    hidden = w1.shape[0]
    HW = H * W

    # Lane axis = the dimension that is 128-friendly / larger.
    def lane_score(n):
        return (n % 128 == 0, n)
    channels_last = lane_score(C) > lane_score(HW)

    if channels_last:
        x_in = jnp.transpose(x, (0, 2, 3, 1)).reshape(B, HW, C)   # layout "b (h w) c"
    else:
        x_in = x.reshape(B, C, HW)                                # layout "b c (h w)"

    # Size TB: in + out blocks, double-buffered => ~4 live copies of the x block.
    vmem_limit = _vmem_limit_bytes()
    elem_bytes = C * HW * jnp.dtype(x.dtype).itemsize
    x_budget = vmem_limit // 2                      # leave room for weights / temps
    max_tb = max(1, x_budget // (4 * elem_bytes))
    TB = _choose_tb(B, max_tb)
    grid = (B // TB,)

    blk = (TB, HW, C) if channels_last else (TB, C, HW)

    out_flat = pl.pallas_call(
        partial(_se_kernel, channels_last=channels_last),
        out_shape=jax.ShapeDtypeStruct(x_in.shape, x.dtype),
        grid_spec=pltpu.PrefetchScalarGridSpec(
            num_scalar_prefetch=0,
            grid=grid,
            in_specs=[
                pl.BlockSpec(blk, lambda b: (b, 0, 0)),
                pl.BlockSpec((hidden, C), lambda b: (0, 0)),   # W1, kept resident
                pl.BlockSpec((C, hidden), lambda b: (0, 0)),   # W2, kept resident
            ],
            out_specs=pl.BlockSpec(blk, lambda b: (b, 0, 0)),
        ),
        compiler_params=pltpu.CompilerParams(
            dimension_semantics=("parallel",),
            vmem_limit_bytes=vmem_limit,
        ),
    )(x_in, w1, w2)

    if channels_last:
        return out_flat.reshape(B, H, W, C).transpose(0, 3, 1, 2)
    return out_flat.reshape(B, C, H, W)


def _reference(x, w1, w2):
    pooled = jnp.mean(x, axis=(2, 3))                       # (B, C)
    h = jnp.maximum(pooled @ w1.T, 0.0)                     # (B, hidden)
    g = jax.nn.sigmoid(h @ w2.T)                            # (B, C)
    return x * g[:, :, None, None]


if __name__ == "__main__":
    # Module config: dim = C, shrinkage_rate = 0.25 -> hidden = C // 4
    B, C, H, W = 2, 32, 16, 16
    hidden = int(C * 0.25)

    key = jax.random.PRNGKey(0)
    kx, k1, k2 = jax.random.split(key, 3)
    x = jax.random.normal(kx, (B, C, H, W), dtype=jnp.float32)
    # nn.Linear weight shapes: (out_features, in_features), no bias
    w1 = jax.random.normal(k1, (hidden, C), dtype=jnp.float32) * 0.1
    w2 = jax.random.normal(k2, (C, hidden), dtype=jnp.float32) * 0.1

    out = squeeze_excitation(x, w1, w2)
    jax.block_until_ready(out)

    ref = _reference(x, w1, w2)
    assert out.shape == x.shape and out.dtype == x.dtype
    assert jnp.allclose(out, ref, atol=1e-5, rtol=1e-5), "mismatch vs reference"

    print("KERNEL_OK")
</pallas_src>

<mosaic_0001>
module attributes {stable_mosaic.version = 11 : i64} {
  func.func @_se_kernel(%arg0: i32, %arg1: memref<1x32x256xf32, #tpu.memory_space<vmem>>, %arg2: memref<8x32xf32, #tpu.memory_space<vmem>>, %arg3: memref<32x8xf32, #tpu.memory_space<vmem>>, %arg4: memref<1x32x256xf32, #tpu.memory_space<vmem>>) attributes {dimension_semantics = [#tpu.dimension_semantics<parallel>], iteration_bounds = array<i64: 2>, scalar_prefetch = 0 : i64, scratch_operands = 0 : i64, tpu.core_type = #tpu.core_type<tc>, window_params = [{transform_indices = @transform_0, window_bounds = array<i64: 1, 32, 256>}, {pipeline_mode = #tpu.pipeline_mode<synchronous>, transform_indices = @transform_1, window_bounds = array<i64: 8, 32>}, {pipeline_mode = #tpu.pipeline_mode<synchronous>, transform_indices = @transform_2, window_bounds = array<i64: 32, 8>}, {transform_indices = @transform_3, window_bounds = array<i64: 1, 32, 256>}]} {
    %c0 = arith.constant 0 : index
    %c0_0 = arith.constant 0 : index
    %c0_1 = arith.constant 0 : index
    %0 = vector.load %arg1[%c0, %c0_0, %c0_1] : memref<1x32x256xf32, #tpu.memory_space<vmem>>, vector<1x32x256xf32>
    %cst = arith.constant dense<0.000000e+00> : vector<1x32xf32>
    %1 = vector.multi_reduction <add>, %0, %cst [2] : vector<1x32x256xf32> to vector<1x32xf32>
    %cst_2 = arith.constant 2.560000e+02 : f32
    %2 = vector.broadcast %cst_2 : f32 to vector<1x32xf32>
    %3 = arith.divf %1, %2 : vector<1x32xf32>
    %c0_3 = arith.constant 0 : index
    %c0_4 = arith.constant 0 : index
    %4 = vector.load %arg2[%c0_3, %c0_4] : memref<8x32xf32, #tpu.memory_space<vmem>>, vector<8x32xf32>
    %cst_5 = arith.constant dense<0.000000e+00> : vector<1x8xf32>
    %5 = tpu.matmul %3, %4, %cst_5 {dimension_numbers = #tpu.dot_dimension_numbers<[1], [1], [0], [0], [0, 0, 1, 0], [], []>} : vector<1x32xf32>, vector<8x32xf32>, vector<1x8xf32> -> vector<1x8xf32>
    %cst_6 = arith.constant 0.000000e+00 : f32
    %6 = vector.broadcast %cst_6 : f32 to vector<1x8xf32>
    %7 = arith.maximumf %5, %6 : vector<1x8xf32>
    %c0_7 = arith.constant 0 : index
    %c0_8 = arith.constant 0 : index
    %8 = vector.load %arg3[%c0_7, %c0_8] : memref<32x8xf32, #tpu.memory_space<vmem>>, vector<32x8xf32>
    %cst_9 = arith.constant dense<0.000000e+00> : vector<1x32xf32>
    %9 = tpu.matmul %7, %8, %cst_9 {dimension_numbers = #tpu.dot_dimension_numbers<[1], [1], [0], [0], [0, 0, 1, 0], [], []>} : vector<1x8xf32>, vector<32x8xf32>, vector<1x32xf32> -> vector<1x32xf32>
    %10 = arith.negf %9 : vector<1x32xf32>
    %11 = math.exp %10 : vector<1x32xf32>
    %cst_10 = arith.constant 1.000000e+00 : f32
    %12 = vector.broadcast %cst_10 : f32 to vector<1x32xf32>
    %13 = arith.addf %12, %11 : vector<1x32xf32>
    %14 = arith.divf %12, %13 : vector<1x32xf32>
    %15 = vector.shape_cast %14 : vector<1x32xf32> to vector<1x32x1xf32>
    %16 = vector.broadcast %15 : vector<1x32x1xf32> to vector<1x32x256xf32>
    %17 = arith.mulf %0, %16 : vector<1x32x256xf32>
    %c0_11 = arith.constant 0 : index
    %c0_12 = arith.constant 0 : index
    %c0_13 = arith.constant 0 : index
    %18 = vector.load %arg4[%c0_11, %c0_12, %c0_13] : memref<1x32x256xf32, #tpu.memory_space<vmem>>, vector<1x32x256xf32>
    tpu.vector_store %arg4[%c0_11, %c0_12, %c0_13], %17 {strides = array<i32>} : memref<1x32x256xf32, #tpu.memory_space<vmem>>, vector<1x32x256xf32>,
    return
  }
  func.func @transform_0(%arg0: i32) -> (i32, i32, i32) {
    %c0_i32 = arith.constant 0 : i32
    %c0_i32_0 = arith.constant 0 : i32
    %c0_i32_1 = arith.constant 0 : i32
    return %arg0, %c0_i32, %c0_i32_0 : i32, i32, i32
  }
  func.func @transform_1(%arg0: i32) -> (i32, i32) {
    %c0_i32 = arith.constant 0 : i32
    %c0_i32_0 = arith.constant 0 : i32
    %c0_i32_1 = arith.constant 0 : i32
    return %c0_i32, %c0_i32_0 : i32, i32
  }
  func.func @transform_2(%arg0: i32) -> (i32, i32) {
    %c0_i32 = arith.constant 0 : i32
    %c0_i32_0 = arith.constant 0 : i32
    %c0_i32_1 = arith.constant 0 : i32
    return %c0_i32, %c0_i32_0 : i32, i32
  }
  func.func @transform_3(%arg0: i32) -> (i32, i32, i32) {
    %c0_i32 = arith.constant 0 : i32
    %c0_i32_0 = arith.constant 0 : i32
    %c0_i32_1 = arith.constant 0 : i32
    return %arg0, %c0_i32, %c0_i32_0 : i32, i32, i32
  }
}

</mosaic_0001>

<llo_original>
// kernel: tpu_custom_call.1
$region0: #{tpu_custom_call.1}
  #allocation0 [shape = 'u32[]', space=smem, size = 0x4, offset = 0x4, fixed_abs, tag = 'smem constant byte address 0x4 - core index']
  #allocation1 [shape = 'u32[144,128]{1,0:T(1,128)}', space=vmem, size = 0x12000, scoped, tag = 'internal scratch']
  %s0 = inlined_call_operand.hbm [shape: f32[2,32,256], index: 0, kind: input, shape index: {}]
  %s1 = inlined_call_operand.vmem [shape: f32[8,32], index: 1, kind: input, shape index: {}]
  %s2 = inlined_call_operand.vmem [shape: f32[32,8], index: 2, kind: input, shape index: {}]
  %s3 = inlined_call_operand.hbm [shape: f32[2,32,256], index: 3, kind: output, shape index: {}]
  %s4 = sld [smem:[#allocation0]]
  $region49: #{tpu_custom_call.1} parent=0
    _
  %s6 = ssub.s32 1, %s4
  %s7 = scalar_select 0, %s6, %s4
  $region1: #{tpu_custom_call.1} parent=0
    #allocation2 [shape = 'u8[65536]{0}', space=vmem, size = 0x10000, scoped, tag = 'input window, operand 0']
    #allocation3 [shape = 's32[2]{0}', space=sflag, size = 0x8, scoped, tag = 'scoped memory for tpu_custom_call.1']
    #allocation4 [shape = 's32[2]{0}', space=sflag, size = 0x8, scoped, tag = 'scoped memory for tpu_custom_call.1']
    #allocation5 [shape = 'u8[65536]{0}', space=vmem, size = 0x10000, scoped, tag = 'output window, operand 0']
    %8 = vsyncpa [#allocation3], 0
    %s9 = scalar_lea.sflag [#allocation3], 1
    %10 = vsyncpa %s9, 0
    %11 = vsyncpa [#allocation4], 0
    %s12 = scalar_lea.sflag [#allocation4], 1
    %13 = vsyncpa %s12, 0
    loop: start=0, step=1, limit=4
    $region2: #{tpu_custom_call.1} parent=1 // loop_pre_header
      _
    $region3: #{tpu_custom_call.1} parent=1 // loop_header
      %s15 = sphi 0, %s19
      %p16 = scmp.ge.s32.totalorder %s15, 4
      %s25 = sphi 0, %s27
      %s28 = sphi 0, %s25
      %s29 = sphi 0, %s28
      %s45 = sphi 0, %s29
      %s49 = sphi 0, %s49
      %s51 = sphi 0, %s49
      %s52 = sphi 0, %s51
      %s66 = sphi 0, %s52
      %s70 = sphi 0, %s70
      %s72 = sphi 0, %s70
      %s73 = sphi 0, %s72
      %s87 = sphi 0, %s73
      %s93 = sphi 0, %s95
      %s96 = sphi 0, %s93
      %s97 = sphi 0, %s96
      %s113 = sphi 0, %s97
    $region4: #{tpu_custom_call.1} parent=1 // loop_header_branch
      %18 = sbr.rel (%p16) target = $region8
    $region5: #{tpu_custom_call.1} parent=1 // loop_body
      %s20 = ssub.s32 %s15, 1
      %s21 = ssub.s32 %s15, 2
      %s22 = sadd.s32 %s15, 1
      %s23 = ssub.s32 %s15, %s22
      %p24 = scmp.eq.s32.totalorder %s23, 0
      %s26 = sadd.s32 %s25, 1
      %s27 = scalar_select %p24, %s25, %s26
      %p30 = pneg %p24
      %p31 = scmp.eq.s32.totalorder %s15, 1
      %p32 = por %p30, %p31
      %p33 = scmp.ne.s32.totalorder %s25, %s28
      %p34 = scmp.eq.s32.totalorder %s15, 0
      %p35 = por %p33, %p34
      %p36 = scmp.ne.s32.totalorder %s25, %s28
      %p37 = scmp.eq.s32.totalorder %s20, 1
      %p38 = por %p36, %p37
      %p39 = scmp.ne.s32.totalorder %s28, %s29
      %p40 = scmp.eq.s32.totalorder %s20, 0
      %p41 = por %p39, %p40
      %p42 = scmp.ne.s32.totalorder %s28, %s29
      %p43 = scmp.eq.s32.totalorder %s21, 1
      %p44 = por %p42, %p43
      %p46 = scmp.ne.s32.totalorder %s29, %s45
      %p47 = scmp.eq.s32.totalorder %s21, 0
      %p48 = por %p46, %p47
      %s50 = sadd.s32 %s49, 1
      %p53 = scmp.eq.s32.totalorder %s15, 1
      %p54 = scmp.ne.s32.totalorder %s49, %s51
      %p55 = scmp.eq.s32.totalorder %s15, 0
      %p56 = por %p54, %p55
      %p57 = scmp.ne.s32.totalorder %s49, %s51
      %p58 = scmp.eq.s32.totalorder %s20, 1
      %p59 = por %p57, %p58
      %p60 = scmp.ne.s32.totalorder %s51, %s52
      %p61 = scmp.eq.s32.totalorder %s20, 0
      %p62 = por %p60, %p61
      %p63 = scmp.ne.s32.totalorder %s51, %s52
      %p64 = scmp.eq.s32.totalorder %s21, 1
      %p65 = por %p63, %p64
      %p67 = scmp.ne.s32.totalorder %s52, %s66
      %p68 = scmp.eq.s32.totalorder %s21, 0
      %p69 = por %p67, %p68
      %s71 = sadd.s32 %s70, 1
      %p74 = scmp.eq.s32.totalorder %s15, 1
      %p75 = scmp.ne.s32.totalorder %s70, %s72
      %p76 = scmp.eq.s32.totalorder %s15, 0
      %p77 = por %p75, %p76
      %p78 = scmp.ne.s32.totalorder %s70, %s72
      %p79 = scmp.eq.s32.totalorder %s20, 1
      %p80 = por %p78, %p79
      %p81 = scmp.ne.s32.totalorder %s72, %s73
      %p82 = scmp.eq.s32.totalorder %s20, 0
      %p83 = por %p81, %p82
      %p84 = scmp.ne.s32.totalorder %s72, %s73
      %p85 = scmp.eq.s32.totalorder %s21, 1
      %p86 = por %p84, %p85
      %p88 = scmp.ne.s32.totalorder %s73, %s87
      %p89 = scmp.eq.s32.totalorder %s21, 0
      %p90 = por %p88, %p89
      %s91 = ssub.s32 %s15, %s22
      %p92 = scmp.eq.s32.totalorder %s91, 0
      %s94 = sadd.s32 %s93, 1
      %s95 = scalar_select %p92, %s93, %s94
      %p98 = pneg %p92
      %p99 = scmp.eq.s32.totalorder %s15, 1
      %p100 = por %p98, %p99
      %p101 = scmp.ne.s32.totalorder %s93, %s96
      %p102 = scmp.eq.s32.totalorder %s15, 0
      %p103 = por %p101, %p102
      %p104 = scmp.ne.s32.totalorder %s93, %s96
      %p105 = scmp.eq.s32.totalorder %s20, 1
      %p106 = por %p104, %p105
      %p107 = scmp.ne.s32.totalorder %s96, %s97
      %p108 = scmp.eq.s32.totalorder %s20, 0
      %p109 = por %p107, %p108
      %p110 = scmp.ne.s32.totalorder %s96, %s97
      %p111 = scmp.eq.s32.totalorder %s21, 1
      %p112 = por %p110, %p111
      %p114 = scmp.ne.s32.totalorder %s97, %s113
      %p115 = scmp.eq.s32.totalorder %s21, 0
      %p116 = por %p114, %p115
      %p117 = scmp.le.s32.totalorder 1, %s15
      %p118 = scmp.lt.s32.totalorder %s15, 3
      %p119 = pnand %p117, %p118
      %p120 = pneg %p119
      // Predicated region
      $region9: #{tpu_custom_call.1} parent=5 // pred_check
        _
      $region10: #{tpu_custom_call.1} parent=5 // pred_check_branch
        %122 = sbr.rel (%p119) target = $region12
      $region11: #{tpu_custom_call.1} parent=5 // pred_region
        %s123 = ssub.s32 %s15, 1
        // Predicated region
        $region13: #{tpu_custom_call.1} parent=11 // pred_check
          %p124 = pneg %p62
        $region14: #{tpu_custom_call.1} parent=11 // pred_check_branch
          %126 = sbr.rel (%p124) target = $region16
        $region15: #{tpu_custom_call.1} parent=11 // pred_region
          _
        $region16: #{tpu_custom_call.1} parent=11 // pred_fallthru
          _
        // Predicated region
        $region17: #{tpu_custom_call.1} parent=11 // pred_check
          %p127 = pneg %p83
        $region18: #{tpu_custom_call.1} parent=11 // pred_check_branch
          %129 = sbr.rel (%p127) target = $region20
        $region19: #{tpu_custom_call.1} parent=11 // pred_region
          _
        $region20: #{tpu_custom_call.1} parent=11 // pred_fallthru
          _
      $region12: #{tpu_custom_call.1} parent=5 // pred_fallthru
        _
      %p130 = scmp.lt.s32.totalorder %s15, 2
      // Predicated region
      $region21: #{tpu_custom_call.1} parent=5 // pred_check
        %p131 = pneg %p130
      $region22: #{tpu_custom_call.1} parent=5 // pred_check_branch
        %133 = sbr.rel (%p131) target = $region24
      $region23: #{tpu_custom_call.1} parent=5 // pred_region
        // Predicated region
        $region25: #{tpu_custom_call.1} parent=23 // pred_check
          %p134 = pneg %p35
        $region26: #{tpu_custom_call.1} parent=23 // pred_check_branch
          %136 = sbr.rel (%p134) target = $region28
        $region27: #{tpu_custom_call.1} parent=23 // pred_region
          %s137 = sand.u32 %s25, 1
          %s138 = scalar_lea.sflag [#allocation3], %s137
          %s139 = sand.u32 %s25, 1
          %s140 = smul.addr %s139, 64
          %s141 = scalar_lea.vmem [#allocation2], %s140
          %s143 = ssub.s32 1024, 1024
          %144 = vsyncadd %s138, %s143
          %s145 = smul.addr %s15, 8
          %s146 = smul.addr %s145, 128
          %s147 = scalar_lea.hbm %s0, %s146
          %s148 = sshll.u32 %s141, 4
          %s149 = int_to_ptr.vmem [resolvable:$true] %s148
          %154 = dma.hbm_to_vmem [thread:$0]  %s147, 1024, %s149, %s138, 256, 256, 16
        $region28: #{tpu_custom_call.1} parent=23 // pred_fallthru
          _
      $region24: #{tpu_custom_call.1} parent=5 // pred_fallthru
        _
      %p155 = scmp.le.s32.totalorder 1, %s15
      %p156 = scmp.lt.s32.totalorder %s15, 3
      %p157 = pnand %p155, %p156
      %p158 = pneg %p157
      // Predicated region
      $region29: #{tpu_custom_call.1} parent=5 // pred_check
        _
      $region30: #{tpu_custom_call.1} parent=5 // pred_check_branch
        %160 = sbr.rel (%p157) target = $region32
      $region31: #{tpu_custom_call.1} parent=5 // pred_region
        %s161 = ssub.s32 %s15, 1
        %s162 = sand.u32 %s28, 1
        %s163 = scalar_lea.sflag [#allocation3], %s162
        %s164 = sand.u32 %s28, 1
        %s165 = smul.addr %s164, 64
        %s166 = scalar_lea.vmem [#allocation2], %s165
        // Predicated region
        $region33: #{tpu_custom_call.1} parent=31 // pred_check
          %p167 = pneg %p41
        $region34: #{tpu_custom_call.1} parent=31 // pred_check_branch
          %169 = sbr.rel (%p167) target = $region36
        $region35: #{tpu_custom_call.1} parent=31 // pred_region
          %170 = dma.done %s163, 1024
        $region36: #{tpu_custom_call.1} parent=31 // pred_fallthru
          _
        %s171 = sand.u32 %s28, 1
        %s172 = scalar_lea.sflag [#allocation3], %s171
        %s173 = sand.u32 %s28, 1
        %s174 = smul.addr %s173, 64
        %s175 = scalar_lea.vmem [#allocation2], %s174
        %p176 = pneg %p41
        %p177 = pneg %p38
        %p178 = pneg %p62
        %p179 = pneg %p59
        %p180 = pneg %p83
        %p181 = pneg %p80
        %p182 = pneg %p109
        %p183 = pneg %p106
        %s184 = sand.u32 %s96, 1
        %s185 = scalar_lea.sflag [#allocation4], %s184
        %s186 = sand.u32 %s96, 1
        %s187 = smul.addr %s186, 64
        %s188 = scalar_lea.vmem [#allocation5], %s187
        %v189 = vld [vmem:[%s166] sm:$0xff]
        %v190 = vld [vmem:[%s166 + $0x8] sm:$0xff]
        %v191 = vld [vmem:[%s166 + $0x10] sm:$0xff]
        %v192 = vld [vmem:[%s166 + $0x18] sm:$0xff]
        %v193 = vld [vmem:[%s166 + $0x20] sm:$0xff]
        %v194 = vld [vmem:[%s166 + $0x28] sm:$0xff]
        %v195 = vld [vmem:[%s166 + $0x30] sm:$0xff]
        %v196 = vld [vmem:[%s166 + $0x38] sm:$0xff]
        %v197 = vadd.f32 %v189, %v190
        %198 = vadd.xlane.f32.xlu0 %v197
        %v199 = vpop.xlane.xlu0 %198
        %v200 = vadd.f32 %v191, %v192
        %201 = vadd.xlane.f32.xlu0 %v200
        %v202 = vpop.xlane.xlu0 %201
        %v203 = vadd.f32 %v193, %v194
        %204 = vadd.xlane.f32.xlu0 %v203
        %v205 = vpop.xlane.xlu0 %204
        %v206 = vadd.f32 %v195, %v196
        %207 = vadd.xlane.f32.xlu0 %v206
        %v208 = vpop.xlane.xlu0 %207
        %v209 = vrcp.pop 256.0
        %v210 = vmul.f32 %v199, %v209
        %v211 = vmul.f32 %v202, %v209
        %v212 = vmul.f32 %v205, %v209
        %v213 = vmul.f32 %v208, %v209
        %v214 = vld [vmem:[%s1] sm:$0xff]
        %v219 = vlaneseq
        %v220 = vand.u32 %v219, 127
        %v221 = vlaneseq
        %v222 = vshrl.u32 %v221, 7
        %v223 = vsub.s32 %v220, %v222
        %v224 = vrot.slane %v210, %v223
        %v225 = vadd.s32 %v220, 4294967288
        %v226 = vlaneseq
        %v227 = vshrl.u32 %v226, 7
        %v228 = vsub.s32 %v225, %v227
        %v229 = vrot.slane %v211, %v228
        %vm230 = vcmask 130112
        %v231 = vsel %vm230, %v229, %v224
        %v232 = vadd.s32 %v220, 4294967280
        %v233 = vlaneseq
        %v234 = vshrl.u32 %v233, 7
        %v235 = vsub.s32 %v232, %v234
        %v236 = vrot.slane %v212, %v235
        %vm237 = vcmask 195712
        %v238 = vsel %vm237, %v236, %v231
        %v239 = vadd.s32 %v220, 4294967272
        %v240 = vlaneseq
        %v241 = vshrl.u32 %v240, 7
        %v242 = vsub.s32 %v239, %v241
        %v243 = vrot.slane %v213, %v242
        %vm244 = vcmask 261312
        %v245 = vsel %vm244, %v243, %v238
        %vm246 = vcmask 261120
        %v247 = vsel %vm246, %v245, 0
        %v250 = vsel %vm246, %v214, 0
        %252 = vmatprep.subr.mxu0 0.0
        %253 = vmatpush1.xpose.msra.mxu0 0.0
        %254 = vmatprep.subr.mxu0 0.0
        %255 = vmatpush1.xpose.msra.mxu0 0.0
        %256 = vmatprep.subr.mxu0 0.0
        %257 = vmatpush1.xpose.msra.mxu0 0.0
        %258 = vmatprep.subr.mxu0 0.0
        %259 = vmatpush1.xpose.msra.mxu0 0.0
        %260 = vmatprep.subr.mxu0 0.0
        %261 = vmatpush1.xpose.msra.mxu0 0.0
        %262 = vmatprep.subr.mxu0 0.0
        %263 = vmatpush1.xpose.msra.mxu0 0.0
        %264 = vmatprep.subr.mxu0 0.0
        %265 = vmatpush1.xpose.msra.mxu0 0.0
        %266 = vmatprep.subr.mxu0 0.0
        %267 = vmatpush1.xpose.msra.mxu0 0.0
        %268 = vmatprep.subr.mxu0 0.0
        %269 = vmatpush1.xpose.msra.mxu0 0.0
        %270 = vmatprep.subr.mxu0 0.0
        %271 = vmatpush1.xpose.msra.mxu0 0.0
        %272 = vmatprep.subr.mxu0 0.0
        %273 = vmatpush1.xpose.msra.mxu0 0.0
        %274 = vmatprep.subr.mxu0 0.0
        %275 = vmatpush1.xpose.msra.mxu0 0.0
        %276 = vmatprep.subr.mxu0 0.0
        %277 = vmatpush1.xpose.msra.mxu0 0.0
        %278 = vmatprep.subr.mxu0 0.0
        %279 = vmatpush1.xpose.msra.mxu0 0.0
        %280 = vmatprep.subr.mxu0 0.0
        %281 = vmatpush1.xpose.msra.mxu0 0.0
        %282 = vmatprep.subr.mxu0 0.0
        %283 = vmatpush1.xpose.msra.mxu0 %v250
        %284 = vmatprep.subr.mxu0 0.0
        %285 = vmatpush2.xpose.msra.mxu0 0.0
        %286 = vmatprep.subr.mxu0 0.0
        %287 = vmatpush2.xpose.msra.mxu0 0.0
        %288 = vmatprep.subr.mxu0 0.0
        %289 = vmatpush2.xpose.msra.mxu0 0.0
        %290 = vmatprep.subr.mxu0 0.0
        %291 = vmatpush2.xpose.msra.mxu0 0.0
        %292 = vmatprep.subr.mxu0 0.0
        %293 = vmatpush2.xpose.msra.mxu0 0.0
        %294 = vmatprep.subr.mxu0 0.0
        %295 = vmatpush2.xpose.msra.mxu0 0.0
        %296 = vmatprep.subr.mxu0 0.0
        %297 = vmatpush2.xpose.msra.mxu0 0.0
        %298 = vmatprep.subr.mxu0 0.0
        %299 = vmatpush2.xpose.msra.mxu0 0.0
        %300 = vmatprep.subr.mxu0 0.0
        %301 = vmatpush2.xpose.msra.mxu0 0.0
        %302 = vmatprep.subr.mxu0 0.0
        %303 = vmatpush2.xpose.msra.mxu0 0.0
        %304 = vmatprep.subr.mxu0 0.0
        %305 = vmatpush2.xpose.msra.mxu0 0.0
        %306 = vmatprep.subr.mxu0 0.0
        %307 = vmatpush2.xpose.msra.mxu0 0.0
        %308 = vmatprep.subr.mxu0 0.0
        %309 = vmatpush2.xpose.msra.mxu0 0.0
        %310 = vmatprep.subr.mxu0 0.0
        %311 = vmatpush2.xpose.msra.mxu0 0.0
        %312 = vmatprep.subr.mxu0 0.0
        %313 = vmatpush2.xpose.msra.mxu0 0.0
        %314 = vmatprep.subr.mxu0 0.0
        %315 = vmatpush2.xpose.msra.mxu0 0.0
        %316 = vmatprep.mubr.f32.mxu0 0.0
        %317 = vmatmul.mubr.f32.gmra.mxu0 %v247
        %v318 = vpop.f32.mrf.mxu0
        %v319 = vadd.f32 0.0, %v318
        %v320 = vpop.f32.mrf.mxu0
        %321 = vdwg.mxu0
        %v322 = vmax.f32 %v319, 0.0
        %v323 = vld [vmem:[%s2] sm:$0xff]
        %v324 = vld [vmem:[%s2 + $0x8] sm:$0xff]
        %v325 = vld [vmem:[%s2 + $0x10] sm:$0xff]
        %v326 = vld [vmem:[%s2 + $0x18] sm:$0xff]
        %vm327 = vcmask 64512
        %v329 = vsel %vm327, %v322, 0
        %v332 = vsel %vm327, %v323, 0
        %v335 = vsel %vm327, %v324, 0
        %v338 = vsel %vm327, %v325, 0
        %v341 = vsel %vm327, %v326, 0
        %343 = vmatprep.subr.mxu0 0.0
        %344 = vmatpush1.xpose.msra.mxu0 0.0
        %345 = vmatprep.subr.mxu0 0.0
        %346 = vmatpush1.xpose.msra.mxu0 0.0
        %347 = vmatprep.subr.mxu0 0.0
        %348 = vmatpush1.xpose.msra.mxu0 0.0
        %349 = vmatprep.subr.mxu0 0.0
        %350 = vmatpush1.xpose.msra.mxu0 0.0
        %351 = vmatprep.subr.mxu0 0.0
        %352 = vmatpush1.xpose.msra.mxu0 0.0
        %353 = vmatprep.subr.mxu0 0.0
        %354 = vmatpush1.xpose.msra.mxu0 0.0
        %355 = vmatprep.subr.mxu0 0.0
        %356 = vmatpush1.xpose.msra.mxu0 0.0
        %357 = vmatprep.subr.mxu0 0.0
        %358 = vmatpush1.xpose.msra.mxu0 0.0
        %359 = vmatprep.subr.mxu0 0.0
        %360 = vmatpush1.xpose.msra.mxu0 0.0
        %361 = vmatprep.subr.mxu0 0.0
        %362 = vmatpush1.xpose.msra.mxu0 0.0
        %363 = vmatprep.subr.mxu0 0.0
        %364 = vmatpush1.xpose.msra.mxu0 0.0
        %365 = vmatprep.subr.mxu0 0.0
        %366 = vmatpush1.xpose.msra.mxu0 0.0
        %367 = vmatprep.subr.mxu0 0.0
        %368 = vmatpush1.xpose.msra.mxu0 %v341
        %369 = vmatprep.subr.mxu0 0.0
        %370 = vmatpush1.xpose.msra.mxu0 %v338
        %371 = vmatprep.subr.mxu0 0.0
        %372 = vmatpush1.xpose.msra.mxu0 %v335
        %373 = vmatprep.subr.mxu0 0.0
        %374 = vmatpush1.xpose.msra.mxu0 %v332
        %375 = vmatprep.subr.mxu0 0.0
        %376 = vmatpush2.xpose.msra.mxu0 0.0
        %377 = vmatprep.subr.mxu0 0.0
        %378 = vmatpush2.xpose.msra.mxu0 0.0
        %379 = vmatprep.subr.mxu0 0.0
        %380 = vmatpush2.xpose.msra.mxu0 0.0
        %381 = vmatprep.subr.mxu0 0.0
        %382 = vmatpush2.xpose.msra.mxu0 0.0
        %383 = vmatprep.subr.mxu0 0.0
        %384 = vmatpush2.xpose.msra.mxu0 0.0
        %385 = vmatprep.subr.mxu0 0.0
        %386 = vmatpush2.xpose.msra.mxu0 0.0
        %387 = vmatprep.subr.mxu0 0.0
        %388 = vmatpush2.xpose.msra.mxu0 0.0
        %389 = vmatprep.subr.mxu0 0.0
        %390 = vmatpush2.xpose.msra.mxu0 0.0
        %391 = vmatprep.subr.mxu0 0.0
        %392 = vmatpush2.xpose.msra.mxu0 0.0
        %393 = vmatprep.subr.mxu0 0.0
        %394 = vmatpush2.xpose.msra.mxu0 0.0
        %395 = vmatprep.subr.mxu0 0.0
        %396 = vmatpush2.xpose.msra.mxu0 0.0
        %397 = vmatprep.subr.mxu0 0.0
        %398 = vmatpush2.xpose.msra.mxu0 0.0
        %399 = vmatprep.subr.mxu0 0.0
        %400 = vmatpush2.xpose.msra.mxu0 0.0
        %401 = vmatprep.subr.mxu0 0.0
        %402 = vmatpush2.xpose.msra.mxu0 0.0
        %403 = vmatprep.subr.mxu0 0.0
        %404 = vmatpush2.xpose.msra.mxu0 0.0
        %405 = vmatprep.subr.mxu0 0.0
        %406 = vmatpush2.xpose.msra.mxu0 0.0
        %407 = vmatprep.mubr.f32.mxu0 0.0
        %408 = vmatmul.mubr.f32.gmra.mxu0 %v329
        %v409 = vpop.f32.mrf.mxu0
        %v410 = vadd.f32 0.0, %v409
        %v411 = vpop.f32.mrf.mxu0
        %412 = vdwg.mxu0
        %v413 = vxor.u32 %v410, 2147483648
        %v414 = vmul.f32 %v413, 1.442695
        %v415 = vpow.pop %v414
        %v416 = vadd.f32 %v415, 1.0
        %v417 = vrcp.pop %v416
        %v418 = vmul.f32 1.0, %v417
        %v419 = vlaneseq
        %v420 = vshrl.u32 %v419, 7
        %v421 = vsub.s32 0, %v420
        %v422 = vrot.slane %v418, %v421
        %424 = vbcast.lane.b32.xlu0 %v422, 256
        %v425 = vpop.permute.xlu0 %424
        %s427 = sor.u32 256, 8
        %428 = vbcast.lane.b32.xlu0 %v422, %s427
        %v429 = vpop.permute.xlu0 %428
        %s431 = sor.u32 256, 16
        %432 = vbcast.lane.b32.xlu0 %v422, %s431
        %v433 = vpop.permute.xlu0 %432
        %s435 = sor.u32 256, 24
        %436 = vbcast.lane.b32.xlu0 %v422, %s435
        %v437 = vpop.permute.xlu0 %436
        %v438 = vmul.f32 %v189, %v425
        %v439 = vmul.f32 %v190, %v425
        %v440 = vmul.f32 %v191, %v429
        %v441 = vmul.f32 %v192, %v429
        %v442 = vmul.f32 %v193, %v433
        %v443 = vmul.f32 %v194, %v433
        %v444 = vmul.f32 %v195, %v437
        %v445 = vmul.f32 %v196, %v437
        %446 = vst [vmem:[%s188] sm:$0xff] %v438
        %447 = vst [vmem:[%s188 + $0x8] sm:$0xff] %v439
        %448 = vst [vmem:[%s188 + $0x10] sm:$0xff] %v440
        %449 = vst [vmem:[%s188 + $0x18] sm:$0xff] %v441
        %450 = vst [vmem:[%s188 + $0x20] sm:$0xff] %v442
        %451 = vst [vmem:[%s188 + $0x28] sm:$0xff] %v443
        %452 = vst [vmem:[%s188 + $0x30] sm:$0xff] %v444
        %453 = vst [vmem:[%s188 + $0x38] sm:$0xff] %v445
        %s454 = sand.u32 %s96, 1
        %s455 = scalar_lea.sflag [#allocation4], %s454
        %s456 = sand.u32 %s96, 1
        %s457 = smul.addr %s456, 64
        %s458 = scalar_lea.vmem [#allocation5], %s457
        // Predicated region
        $region37: #{tpu_custom_call.1} parent=31 // pred_check
          %p459 = pneg %p106
        $region38: #{tpu_custom_call.1} parent=31 // pred_check_branch
          %461 = sbr.rel (%p459) target = $region40
        $region39: #{tpu_custom_call.1} parent=31 // pred_region
          %s463 = ssub.s32 1024, 1024
          %464 = vsyncadd %s455, %s463
          %s465 = smul.addr %s20, 8
          %s466 = smul.addr %s465, 128
          %s467 = scalar_lea.hbm %s3, %s466
          %s468 = sshll.u32 %s458, 4
          %s469 = int_to_ptr.vmem [resolvable:$true] %s468
          %474 = dma.vmem_to_hbm [thread:$0]  %s469, 1024, %s467, %s455, 256, 256, 16
        $region40: #{tpu_custom_call.1} parent=31 // pred_fallthru
          _
      $region32: #{tpu_custom_call.1} parent=5 // pred_fallthru
        _
      %p475 = scmp.le.s32.totalorder 2, %s15
      // Predicated region
      $region41: #{tpu_custom_call.1} parent=5 // pred_check
        %p476 = pneg %p475
      $region42: #{tpu_custom_call.1} parent=5 // pred_check_branch
        %478 = sbr.rel (%p476) target = $region44
      $region43: #{tpu_custom_call.1} parent=5 // pred_region
        %s479 = ssub.s32 %s15, 2
        // Predicated region
        $region45: #{tpu_custom_call.1} parent=43 // pred_check
          %p480 = pneg %p112
        $region46: #{tpu_custom_call.1} parent=43 // pred_check_branch
          %482 = sbr.rel (%p480) target = $region48
        $region47: #{tpu_custom_call.1} parent=43 // pred_region
          %s483 = sand.u32 %s97, 1
          %s484 = scalar_lea.sflag [#allocation4], %s483
          %s485 = sand.u32 %s97, 1
          %s486 = smul.addr %s485, 64
          %s487 = scalar_lea.vmem [#allocation5], %s486
          %488 = dma.done %s484, 1024
        $region48: #{tpu_custom_call.1} parent=43 // pred_fallthru
          _
      $region44: #{tpu_custom_call.1} parent=5 // pred_fallthru
        _
    $region6: #{tpu_custom_call.1} parent=1 // loop_footer
      %s19 = sadd.s32 1, %s15
    $region7: #{tpu_custom_call.1} parent=1 // loop_footer_branch
      %14 = sbr.rel target = $region3
    $region8: #{tpu_custom_call.1} parent=1 // loop_exit
      _
    %489 = vsyncpa [#allocation3], 1
    %s490 = scalar_lea.sflag [#allocation3], 1
    %491 = vsyncpa %s490, 1
    %492 = vsyncpa [#allocation4], 1
    %s493 = scalar_lea.sflag [#allocation4], 1
    %494 = vsyncpa %s493, 1

</llo_original>
